<compile_context>
chip_gen: v7x
topology: tpu7x:2x2x1
jax: 0.10.0
libtpu: 0.0.40
codegen_flags: <defaults>
</compile_context>

<pallas_src>
import functools

import jax
import jax.numpy as jnp
from jax.experimental import pallas as pl
from jax.experimental.pallas import tpu as pltpu


def _round_up(a, m):
    return ((a + m - 1) // m) * m


# ---------------------------------------------------------------------------
# Kernels
# ---------------------------------------------------------------------------
def _ffn_kernel_resident(x_ref, w1_ref, b1_ref, w2_ref, b2_ref, o_ref):
    # x_ref : (tn, d_model_p)      bf16
    # w1_ref: (d_model_p, dff_p)   bf16  (resident: constant index_map, DMA'd once)
    # b1_ref: (1, dff_p)           f32
    # w2_ref: (dff_p, d_model_p)   bf16  (resident)
    # b2_ref: (1, d_model_p)       f32
    # o_ref : (tn, d_model_p)      f32
    h = jnp.dot(x_ref[...], w1_ref[...], preferred_element_type=jnp.float32)
    h = h + b1_ref[...]
    # tanh GELU -> EUP (free VLIW slot); close to torch.nn.GELU() exact erf variant.
    h = jax.nn.gelu(h, approximate=True)
    o_ref[...] = (jnp.dot(h.astype(w2_ref.dtype), w2_ref[...],
                          preferred_element_type=jnp.float32)
                  + b2_ref[...]).astype(o_ref.dtype)


def _ffn_kernel_tiled(x_ref, w1_ref, b1_ref, w2_ref, b2_ref, o_ref):
    # dff tiled along grid axis 1; the f32 output block (index depends only on i)
    # is resident across that axis, so accumulate directly into it (no scratch).
    j = pl.program_id(1)

    @pl.when(j == 0)
    def _():
        o_ref[...] = jnp.zeros_like(o_ref)

    h = jnp.dot(x_ref[...], w1_ref[...], preferred_element_type=jnp.float32)
    h = h + b1_ref[...]
    h = jax.nn.gelu(h, approximate=True)
    o_ref[...] += jnp.dot(h.astype(w2_ref.dtype), w2_ref[...],
                          preferred_element_type=jnp.float32)

    @pl.when(j == pl.num_programs(1) - 1)
    def _():
        o_ref[...] += b2_ref[...]


# ---------------------------------------------------------------------------
# Host-side planning (chip-aware tile sizes & VMEM budget)
# ---------------------------------------------------------------------------
def _physical_vmem_bytes():
    try:
        info = pltpu.get_tpu_info()
        cap = getattr(info, "vmem_capacity_bytes", None)
        if cap:
            return int(cap)
    except Exception:
        pass
    kind = ""
    try:
        kind = jax.devices()[0].device_kind.lower()
    except Exception:
        pass
    if "v7" in kind or "7x" in kind:
        return 64 * 1024 * 1024          # v7x: 64 MiB per TensorCore
    return 128 * 1024 * 1024             # v5e / v6e: 128 MiB


def _num_tensorcores():
    kind = ""
    try:
        kind = jax.devices()[0].device_kind.lower()
    except Exception:
        pass
    return 2 if ("v7" in kind or "7x" in kind) else 1


def _maybe_split_for_megacore(tn_eff, n):
    """Guarantee >=2 token tiles on 2-TC chips (v7x) when N is large enough."""
    if _num_tensorcores() < 2:
        return tn_eff
    n_p = _round_up(n, tn_eff)
    if n_p // tn_eff > 1:
        return tn_eff
    if n >= 32:
        return _round_up((n + 1) // 2, 16)
    return tn_eff


def _plan(n, d_model, dff, force_mode=None):
    itemsize = 2  # bf16 compute dtype
    d_model_p = _round_up(d_model, 128)
    dff_p = _round_up(dff, 128)

    phys = _physical_vmem_bytes()
    budget = max(phys - (16 << 20), 32 << 20)   # headroom for compiler-internal scratch

    n16 = _round_up(max(n, 1), 16)
    bias_bytes = 2 * (dff_p + d_model_p) * 4
    # Count weights double-buffered (conservative; Pallas only DMAs them once).
    weight_bytes = 2 * 2 * d_model_p * dff_p * itemsize

    def resident_fp(tn):
        return (weight_bytes + bias_bytes
                + 2 * tn * d_model_p * itemsize   # x tiles (bf16, double-buffered)
                + 2 * tn * d_model_p * 4          # output tiles (f32, double-buffered)
                + tn * dff_p * 4)                 # GELU intermediate (f32)

    def tiled_fp(tn, tdff):
        return (2 * tn * d_model_p * itemsize
                + 2 * d_model_p * tdff * itemsize
                + 2 * tdff * d_model_p * itemsize
                + 2 * (tdff + d_model_p) * 4
                + 2 * tn * d_model_p * 4
                + tn * tdff * 4)

    tn_candidates = (2048, 1024, 512, 256, 128, 64, 32, 16)

    if force_mode != "tiled":
        for tn in tn_candidates:
            tn_eff = min(tn, n16)
            if resident_fp(tn_eff) <= budget:
                tn_eff = _maybe_split_for_megacore(tn_eff, n)
                fp = resident_fp(tn_eff)
                return dict(mode="resident", tn=tn_eff, tdff=dff_p,
                            d_model_p=d_model_p, dff_p=dff_p,
                            vmem_limit=int(min(budget,
                                               max(fp + fp // 4 + (4 << 20), 32 << 20))))
        if force_mode == "resident":
            raise ValueError("weights too large for resident mode on this chip")

    for tn in tn_candidates:
        tn_eff = min(tn, n16)
        for tdff in (2048, 1024, 512, 256, 128):
            tdff_eff = min(tdff, dff_p)
            if tiled_fp(tn_eff, tdff_eff) <= budget:
                tn_eff = _maybe_split_for_megacore(tn_eff, n)
                fp = tiled_fp(tn_eff, tdff_eff)
                return dict(mode="tiled", tn=tn_eff, tdff=tdff_eff,
                            d_model_p=d_model_p, dff_p=_round_up(dff_p, tdff_eff),
                            vmem_limit=int(min(budget,
                                               max(fp + fp // 4 + (4 << 20), 32 << 20))))
    raise ValueError("Could not find a tile configuration that fits VMEM")


# ---------------------------------------------------------------------------
# pallas_call wrapper
# ---------------------------------------------------------------------------
@functools.partial(jax.jit, static_argnames=("mode", "tn", "tdff",
                                             "d_model_p", "dff_p", "vmem_limit"))
def _ffn_impl(x2d, w1, b1, w2, b2, *, mode, tn, tdff, d_model_p, dff_p, vmem_limit):
    n, d_model = x2d.shape
    dff = w1.shape[1]
    compute_dtype = jnp.bfloat16
    itemsize = 2

    n_p = _round_up(n, tn)
    n_tiles = n_p // tn

    # Zero padding is exact: GELU(0) == 0 and padded weight rows/cols are 0.
    x_p = jnp.pad(x2d, ((0, n_p - n), (0, d_model_p - d_model))).astype(compute_dtype)
    w1_p = jnp.pad(w1, ((0, d_model_p - d_model), (0, dff_p - dff))).astype(compute_dtype)
    w2_p = jnp.pad(w2, ((0, dff_p - dff), (0, d_model_p - d_model))).astype(compute_dtype)
    b1_p = jnp.pad(b1, (0, dff_p - dff)).reshape(1, dff_p).astype(jnp.float32)
    b2_p = jnp.pad(b2, (0, d_model_p - d_model)).reshape(1, d_model_p).astype(jnp.float32)

    if mode == "resident":
        grid = (n_tiles,)
        in_specs = [
            pl.BlockSpec((tn, d_model_p), lambda i: (i, 0)),          # x
            pl.BlockSpec((d_model_p, dff_p), lambda i: (0, 0)),       # w1 (resident)
            pl.BlockSpec((1, dff_p), lambda i: (0, 0)),               # b1
            pl.BlockSpec((dff_p, d_model_p), lambda i: (0, 0)),       # w2 (resident)
            pl.BlockSpec((1, d_model_p), lambda i: (0, 0)),           # b2
        ]
        out_specs = pl.BlockSpec((tn, d_model_p), lambda i: (i, 0))
        kernel = _ffn_kernel_resident
        dims = ("parallel",)
        weight_read_bytes = (w1_p.size + w2_p.size) * itemsize        # DMA'd once
    else:
        dff_tiles = dff_p // tdff
        grid = (n_tiles, dff_tiles)
        in_specs = [
            pl.BlockSpec((tn, d_model_p), lambda i, j: (i, 0)),       # x
            pl.BlockSpec((d_model_p, tdff), lambda i, j: (0, j)),     # w1
            pl.BlockSpec((1, tdff), lambda i, j: (0, j)),             # b1
            pl.BlockSpec((tdff, d_model_p), lambda i, j: (j, 0)),     # w2
            pl.BlockSpec((1, d_model_p), lambda i, j: (0, 0)),        # b2
        ]
        out_specs = pl.BlockSpec((tn, d_model_p), lambda i, j: (i, 0))
        kernel = _ffn_kernel_tiled
        dims = ("parallel", "arbitrary")
        weight_read_bytes = (w1_p.size + w2_p.size) * itemsize * n_tiles  # re-streamed

    cost = pl.CostEstimate(
        flops=4 * n_p * d_model_p * dff_p,            # two matmuls, 2 flops / MAC
        transcendentals=n_p * dff_p,                  # tanh GELU
        bytes_accessed=(x_p.size * itemsize
                        + weight_read_bytes
                        + (b1_p.size + b2_p.size) * 4
                        + n_p * d_model_p * 4),
    )

    out = pl.pallas_call(
        kernel,
        out_shape=jax.ShapeDtypeStruct((n_p, d_model_p), jnp.float32),
        grid_spec=pltpu.PrefetchScalarGridSpec(
            num_scalar_prefetch=0,
            grid=grid,
            in_specs=in_specs,
            out_specs=out_specs,
        ),
        compiler_params=pltpu.CompilerParams(
            dimension_semantics=dims,
            vmem_limit_bytes=vmem_limit,
        ),
        cost_estimate=cost,
    )(x_p, w1_p, b1_p, w2_p, b2_p)

    return out[:n, :d_model]


def feed_forward(x, w1, b1, w2, b2, *, force_mode=None):
    """x: [batch, seq, d_model] float32. Returns same shape (float32).

    Equivalent to torch FeedForward in eval mode (dropout = identity).
    """
    batch, seq, d_model = x.shape
    dff = w1.shape[1]
    n = batch * seq
    plan = _plan(n, d_model, dff, force_mode=force_mode)
    out2d = _ffn_impl(x.reshape(n, d_model), w1, b1, w2, b2, **plan)
    return out2d.reshape(batch, seq, d_model)


def init_params(key, d_model, dff):
    # Deterministic init mimicking torch.nn.Linear: U(-1/sqrt(fan_in), 1/sqrt(fan_in))
    k1, k2, k3, k4 = jax.random.split(key, 4)
    lim1 = 1.0 / (d_model ** 0.5)
    lim2 = 1.0 / (dff ** 0.5)
    w1 = jax.random.uniform(k1, (d_model, dff), jnp.float32, -lim1, lim1)
    b1 = jax.random.uniform(k2, (dff,), jnp.float32, -lim1, lim1)
    w2 = jax.random.uniform(k3, (dff, d_model), jnp.float32, -lim2, lim2)
    b2 = jax.random.uniform(k4, (d_model,), jnp.float32, -lim2, lim2)
    return w1, b1, w2, b2


def _reference(x, w1, b1, w2, b2):
    # Matches kernel arithmetic: bf16 MXU inputs, f32 accumulation, tanh GELU.
    bf16 = jnp.bfloat16
    b, s, d = x.shape
    xr = x.reshape(-1, d).astype(bf16)
    h = jnp.dot(xr, w1.astype(bf16), preferred_element_type=jnp.float32) + b1
    h = jax.nn.gelu(h, approximate=True)
    r = jnp.dot(h.astype(bf16), w2.astype(bf16),
                preferred_element_type=jnp.float32) + b2
    return r.reshape(b, s, d)


if __name__ == "__main__":
    key = jax.random.PRNGKey(0)
    kx, kp, kx2, kp2 = jax.random.split(key, 4)

    # --- test 1: default (weight-resident) path -------------------------------
    batch, seq, d_model, dff = 2, 8, 32, 128
    x = jax.random.normal(kx, (batch, seq, d_model), jnp.float32)
    w1, b1, w2, b2 = init_params(kp, d_model, dff)

    out = jax.block_until_ready(feed_forward(x, w1, b1, w2, b2))
    assert out.shape == (batch, seq, d_model)
    ref = _reference(x, w1, b1, w2, b2)
    # NOTE: bf16 + tanh-GELU numerics differ slightly from a pure-f32 erf-GELU torch
    # reference; parity tests against torch should use ~1e-2 tolerances.
    assert jnp.allclose(out, ref, atol=1e-2, rtol=1e-2), (
        float(jnp.max(jnp.abs(out - ref))))

    # --- test 2: exercise the dff-tiled accumulation path ---------------------
    d_model2, dff2 = 32, 256
    x2 = jax.random.normal(kx2, (batch, seq, d_model2), jnp.float32)
    w1b, b1b, w2b, b2b = init_params(kp2, d_model2, dff2)
    plan_tiled = dict(mode="tiled", tn=16, tdff=128, d_model_p=128, dff_p=256,
                      vmem_limit=32 << 20)
    out2 = _ffn_impl(x2.reshape(-1, d_model2), w1b, b1b, w2b, b2b, **plan_tiled)
    out2 = jax.block_until_ready(out2).reshape(batch, seq, d_model2)
    ref2 = _reference(x2, w1b, b1b, w2b, b2b)
    assert jnp.allclose(out2, ref2, atol=1e-2, rtol=1e-2), (
        float(jnp.max(jnp.abs(out2 - ref2))))

    print("KERNEL_OK")
</pallas_src>

<mosaic_0001>
module attributes {stable_mosaic.version = 11 : i64} {
  func.func @_ffn_kernel_resident(%arg0: i32, %arg1: memref<16x128xbf16, #tpu.memory_space<vmem>>, %arg2: memref<128x128xbf16, #tpu.memory_space<vmem>>, %arg3: memref<1x128xf32, #tpu.memory_space<vmem>>, %arg4: memref<128x128xbf16, #tpu.memory_space<vmem>>, %arg5: memref<1x128xf32, #tpu.memory_space<vmem>>, %arg6: memref<16x128xf32, #tpu.memory_space<vmem>>) attributes {dimension_semantics = [#tpu.dimension_semantics<parallel>], iteration_bounds = array<i64: 1>, scalar_prefetch = 0 : i64, scratch_operands = 0 : i64, tpu.core_type = #tpu.core_type<tc>, window_params = [{transform_indices = @transform_0, window_bounds = array<i64: 16, 128>}, {pipeline_mode = #tpu.pipeline_mode<synchronous>, transform_indices = @transform_1, window_bounds = array<i64: 128, 128>}, {pipeline_mode = #tpu.pipeline_mode<synchronous>, transform_indices = @transform_2, window_bounds = array<i64: 1, 128>}, {pipeline_mode = #tpu.pipeline_mode<synchronous>, transform_indices = @transform_3, window_bounds = array<i64: 128, 128>}, {pipeline_mode = #tpu.pipeline_mode<synchronous>, transform_indices = @transform_4, window_bounds = array<i64: 1, 128>}, {transform_indices = @transform_5, window_bounds = array<i64: 16, 128>}]} {
    %c0 = arith.constant 0 : index
    %c0_0 = arith.constant 0 : index
    %0 = vector.load %arg1[%c0, %c0_0] : memref<16x128xbf16, #tpu.memory_space<vmem>>, vector<16x128xbf16>
    %c0_1 = arith.constant 0 : index
    %c0_2 = arith.constant 0 : index
    %1 = vector.load %arg2[%c0_1, %c0_2] : memref<128x128xbf16, #tpu.memory_space<vmem>>, vector<128x128xbf16>
    %cst = arith.constant dense<0.000000e+00> : vector<16x128xf32>
    %2 = tpu.matmul %0, %1, %cst {dimension_numbers = #tpu.dot_dimension_numbers<[1], [0], [0], [1], [0, 0, 1, 1], [], []>} : vector<16x128xbf16>, vector<128x128xbf16>, vector<16x128xf32> -> vector<16x128xf32>
    %c0_3 = arith.constant 0 : index
    %c0_4 = arith.constant 0 : index
    %3 = vector.load %arg3[%c0_3, %c0_4] : memref<1x128xf32, #tpu.memory_space<vmem>>, vector<1x128xf32>
    %4 = vector.broadcast %3 : vector<1x128xf32> to vector<16x128xf32>
    %5 = arith.addf %2, %4 : vector<16x128xf32>
    %6 = arith.mulf %5, %5 : vector<16x128xf32>
    %7 = arith.mulf %5, %6 : vector<16x128xf32>
    %cst_5 = arith.constant 4.471500e-02 : f32
    %8 = vector.broadcast %cst_5 : f32 to vector<16x128xf32>
    %9 = arith.mulf %8, %7 : vector<16x128xf32>
    %10 = arith.addf %5, %9 : vector<16x128xf32>
    %cst_6 = arith.constant 0.797884583 : f32
    %11 = vector.broadcast %cst_6 : f32 to vector<16x128xf32>
    %12 = arith.mulf %11, %10 : vector<16x128xf32>
    %13 = math.tanh %12 : vector<16x128xf32>
    %cst_7 = arith.constant 1.000000e+00 : f32
    %14 = vector.broadcast %cst_7 : f32 to vector<16x128xf32>
    %15 = arith.addf %14, %13 : vector<16x128xf32>
    %cst_8 = arith.constant 5.000000e-01 : f32
    %16 = vector.broadcast %cst_8 : f32 to vector<16x128xf32>
    %17 = arith.mulf %16, %15 : vector<16x128xf32>
    %18 = arith.mulf %5, %17 : vector<16x128xf32>
    %19 = arith.truncf %18 : vector<16x128xf32> to vector<16x128xbf16>
    %c0_9 = arith.constant 0 : index
    %c0_10 = arith.constant 0 : index
    %20 = vector.load %arg4[%c0_9, %c0_10] : memref<128x128xbf16, #tpu.memory_space<vmem>>, vector<128x128xbf16>
    %cst_11 = arith.constant dense<0.000000e+00> : vector<16x128xf32>
    %21 = tpu.matmul %19, %20, %cst_11 {dimension_numbers = #tpu.dot_dimension_numbers<[1], [0], [0], [1], [0, 0, 1, 1], [], []>} : vector<16x128xbf16>, vector<128x128xbf16>, vector<16x128xf32> -> vector<16x128xf32>
    %c0_12 = arith.constant 0 : index
    %c0_13 = arith.constant 0 : index
    %22 = vector.load %arg5[%c0_12, %c0_13] : memref<1x128xf32, #tpu.memory_space<vmem>>, vector<1x128xf32>
    %23 = vector.broadcast %22 : vector<1x128xf32> to vector<16x128xf32>
    %24 = arith.addf %21, %23 : vector<16x128xf32>
    %c0_14 = arith.constant 0 : index
    %c0_15 = arith.constant 0 : index
    %25 = vector.load %arg6[%c0_14, %c0_15] : memref<16x128xf32, #tpu.memory_space<vmem>>, vector<16x128xf32>
    tpu.vector_store %arg6[%c0_14, %c0_15], %24 {strides = array<i32>} : memref<16x128xf32, #tpu.memory_space<vmem>>, vector<16x128xf32>,
    return
  }
  func.func @transform_0(%arg0: i32) -> (i32, i32) {
    %c0_i32 = arith.constant 0 : i32
    %c0_i32_0 = arith.constant 0 : i32
    return %arg0, %c0_i32 : i32, i32
  }
  func.func @transform_1(%arg0: i32) -> (i32, i32) {
    %c0_i32 = arith.constant 0 : i32
    %c0_i32_0 = arith.constant 0 : i32
    %c0_i32_1 = arith.constant 0 : i32
    return %c0_i32, %c0_i32_0 : i32, i32
  }
  func.func @transform_2(%arg0: i32) -> (i32, i32) {
    %c0_i32 = arith.constant 0 : i32
    %c0_i32_0 = arith.constant 0 : i32
    %c0_i32_1 = arith.constant 0 : i32
    return %c0_i32, %c0_i32_0 : i32, i32
  }
  func.func @transform_3(%arg0: i32) -> (i32, i32) {
    %c0_i32 = arith.constant 0 : i32
    %c0_i32_0 = arith.constant 0 : i32
    %c0_i32_1 = arith.constant 0 : i32
    return %c0_i32, %c0_i32_0 : i32, i32
  }
  func.func @transform_4(%arg0: i32) -> (i32, i32) {
    %c0_i32 = arith.constant 0 : i32
    %c0_i32_0 = arith.constant 0 : i32
    %c0_i32_1 = arith.constant 0 : i32
    return %c0_i32, %c0_i32_0 : i32, i32
  }
  func.func @transform_5(%arg0: i32) -> (i32, i32) {
    %c0_i32 = arith.constant 0 : i32
    %c0_i32_0 = arith.constant 0 : i32
    return %arg0, %c0_i32 : i32, i32
  }
}

</mosaic_0001>

<llo_original>
// kernel: _ffn_impl.1
$region0: #{_ffn_impl.1}
  #allocation0 [shape = 'u32[]', space=smem, size = 0x4, offset = 0x4, fixed_abs, tag = 'smem constant byte address 0x4 - core index']
  #allocation1 [shape = 'u32[144,128]{1,0:T(1,128)}', space=vmem, size = 0x12000, scoped, tag = 'internal scratch']
  %s0 = inlined_call_operand.vmem [shape: bf16[16,128], index: 0, kind: input, shape index: {}]
  %s1 = inlined_call_operand.vmem [shape: bf16[128,128], index: 1, kind: input, shape index: {}]
  %s2 = inlined_call_operand.vmem [shape: f32[1,128], index: 2, kind: input, shape index: {}]
  %s3 = inlined_call_operand.vmem [shape: bf16[128,128], index: 3, kind: input, shape index: {}]
  %s4 = inlined_call_operand.vmem [shape: f32[1,128], index: 4, kind: input, shape index: {}]
  %s5 = inlined_call_operand.hbm [shape: f32[16,128], index: 5, kind: output, shape index: {}]
  %s6 = sld [smem:[#allocation0]]
  $region30: #{_ffn_impl.1} parent=0
    _
  %s8 = ssub.s32 1, %s6
  %s9 = scalar_select 0, %s8, %s6
  $region1: #{_ffn_impl.1} parent=0
    #allocation2 [shape = 'u8[8192]{0}', space=vmem, size = 0x2000, scoped, tag = 'output window, operand 0, single buffered']
    #allocation3 [shape = 's32[1]{0}', space=sflag, size = 0x4, scoped, tag = 'scoped memory for _ffn_impl.1']
    %10 = vsyncpa [#allocation3], 0
    // Predicated region
    $region2: #{_ffn_impl.1} parent=1 // pred_check
      _
    $region3: #{_ffn_impl.1} parent=1 // pred_check_branch
      %12 = sbr.rel (0) target = $region5
    $region4: #{_ffn_impl.1} parent=1 // pred_region
      _
    $region5: #{_ffn_impl.1} parent=1 // pred_fallthru
      _
    // Predicated region
    $region6: #{_ffn_impl.1} parent=1 // pred_check
      _
    $region7: #{_ffn_impl.1} parent=1 // pred_check_branch
      %14 = sbr.rel (0) target = $region9
    $region8: #{_ffn_impl.1} parent=1 // pred_region
      _
    $region9: #{_ffn_impl.1} parent=1 // pred_fallthru
      _
    // Predicated region
    $region10: #{_ffn_impl.1} parent=1 // pred_check
      _
    $region11: #{_ffn_impl.1} parent=1 // pred_check_branch
      %16 = sbr.rel (0) target = $region13
    $region12: #{_ffn_impl.1} parent=1 // pred_region
      _
    $region13: #{_ffn_impl.1} parent=1 // pred_fallthru
      _
    // Predicated region
    $region14: #{_ffn_impl.1} parent=1 // pred_check
      _
    $region15: #{_ffn_impl.1} parent=1 // pred_check_branch
      %18 = sbr.rel (0) target = $region17
    $region16: #{_ffn_impl.1} parent=1 // pred_region
      _
    $region17: #{_ffn_impl.1} parent=1 // pred_fallthru
      _
    // Predicated region
    $region18: #{_ffn_impl.1} parent=1 // pred_check
      _
    $region19: #{_ffn_impl.1} parent=1 // pred_check_branch
      %20 = sbr.rel (0) target = $region21
    $region20: #{_ffn_impl.1} parent=1 // pred_region
      _
    $region21: #{_ffn_impl.1} parent=1 // pred_fallthru
      _
    %v22 = vld [vmem:[%s0] sm:$0xf]
    %v23 = vld [vmem:[%s0 + $0x4] sm:$0xf]
    %v24 = vld [vmem:[%s1] sm:$0xf]
    %v25 = vld [vmem:[%s1 + $0x4] sm:$0xf]
    %v26 = vld [vmem:[%s1 + $0x8] sm:$0xf]
    %v27 = vld [vmem:[%s1 + $0xc] sm:$0xf]
    %v28 = vld [vmem:[%s1 + $0x10] sm:$0xf]
    %v29 = vld [vmem:[%s1 + $0x14] sm:$0xf]
    %v30 = vld [vmem:[%s1 + $0x18] sm:$0xf]
    %v31 = vld [vmem:[%s1 + $0x1c] sm:$0xf]
    %v32 = vld [vmem:[%s1 + $0x20] sm:$0xf]
    %v33 = vld [vmem:[%s1 + $0x24] sm:$0xf]
    %v34 = vld [vmem:[%s1 + $0x28] sm:$0xf]
    %v35 = vld [vmem:[%s1 + $0x2c] sm:$0xf]
    %v36 = vld [vmem:[%s1 + $0x30] sm:$0xf]
    %v37 = vld [vmem:[%s1 + $0x34] sm:$0xf]
    %v38 = vld [vmem:[%s1 + $0x38] sm:$0xf]
    %v39 = vld [vmem:[%s1 + $0x3c] sm:$0xf]
    %v40 = vld [vmem:[%s2] sm:$0x1]
    %v42 = vlaneseq
    %v43 = vshrl.u32 %v42, 7
    %v44 = vsub.s32 0, %v43
    %v45 = vrot.slane %v40, %v44
    %v49 = vunpack.c.l.b16 %v22
    %v50 = vunpack.c.l.b16 %v23
    %v51 = vpack.c.b16 %v50, %v49
    %v69 = vunpack.c.l.b16 %v24
    %v70 = vunpack.c.l.b16 %v25
    %v71 = vunpack.c.l.b16 %v26
    %v72 = vunpack.c.l.b16 %v27
    %v73 = vunpack.c.l.b16 %v28
    %v74 = vunpack.c.l.b16 %v29
    %v75 = vunpack.c.l.b16 %v30
    %v76 = vunpack.c.l.b16 %v31
    %v77 = vunpack.c.l.b16 %v32
    %v78 = vunpack.c.l.b16 %v33
    %v79 = vunpack.c.l.b16 %v34
    %v80 = vunpack.c.l.b16 %v35
    %v81 = vunpack.c.l.b16 %v36
    %v82 = vunpack.c.l.b16 %v37
    %v83 = vunpack.c.l.b16 %v38
    %v84 = vunpack.c.l.b16 %v39
    %v85 = vpack.c.b16 %v70, %v69
    %v86 = vpack.c.b16 %v72, %v71
    %v87 = vpack.c.b16 %v74, %v73
    %v88 = vpack.c.b16 %v76, %v75
    %v89 = vpack.c.b16 %v78, %v77
    %v90 = vpack.c.b16 %v80, %v79
    %v91 = vpack.c.b16 %v82, %v81
    %v92 = vpack.c.b16 %v84, %v83
    %101 = vmatprep.subr.bf16.mxu0 0
    %102 = vmatpush1.bf16.msra.mxu0 %v85
    %103 = vmatprep.subr.bf16.mxu0 0
    %104 = vmatpush1.bf16.msra.mxu0 %v86
    %105 = vmatprep.subr.bf16.mxu0 0
    %106 = vmatpush1.bf16.msra.mxu0 %v87
    %107 = vmatprep.subr.bf16.mxu0 0
    %108 = vmatpush1.bf16.msra.mxu0 %v88
    %109 = vmatprep.subr.bf16.mxu0 0
    %110 = vmatpush1.bf16.msra.mxu0 %v89
    %111 = vmatprep.subr.bf16.mxu0 0
    %112 = vmatpush1.bf16.msra.mxu0 %v90
    %113 = vmatprep.subr.bf16.mxu0 0
    %114 = vmatpush1.bf16.msra.mxu0 %v91
    %115 = vmatprep.subr.bf16.mxu0 0
    %116 = vmatpush1.bf16.msra.mxu0 %v92
    %117 = vmatprep.subr.bf16.mxu0 0
    %118 = vmatpush1.bf16.msra.mxu0 0
    %119 = vmatprep.subr.bf16.mxu0 0
    %120 = vmatpush1.bf16.msra.mxu0 0
    %121 = vmatprep.subr.bf16.mxu0 0
    %122 = vmatpush1.bf16.msra.mxu0 0
    %123 = vmatprep.subr.bf16.mxu0 0
    %124 = vmatpush1.bf16.msra.mxu0 0
    %125 = vmatprep.subr.bf16.mxu0 0
    %126 = vmatpush1.bf16.msra.mxu0 0
    %127 = vmatprep.subr.bf16.mxu0 0
    %128 = vmatpush1.bf16.msra.mxu0 0
    %129 = vmatprep.subr.bf16.mxu0 0
    %130 = vmatpush1.bf16.msra.mxu0 0
    %131 = vmatprep.subr.bf16.mxu0 0
    %132 = vmatpush1.bf16.msra.mxu0 0
    %133 = vmatprep.mubr.bf16.mxu0 0
    %134 = vmatmul.mubr.bf16.gmra.mrb[0].mxu0 %v51
    %v135 = vpop.f32.mrb[0].mxu0
    %v136 = vadd.f32 %v45, %v135
    %v137 = vpop.f32.mrb[0].mxu0
    %v138 = vpop.f32.mrb[0].mxu0
    %v139 = vadd.f32 %v45, %v138
    %v140 = vpop.f32.mrb[0].mxu0
    %141 = vdwg.mxu0
    %v142 = vmul.f32 %v136, %v136
    %v143 = vmul.f32 %v139, %v139
    %v144 = vmul.f32 %v136, %v142
    %v145 = vmul.f32 %v139, %v143
    %v146 = vmul.f32 %v144, 0.044715
    %v147 = vmul.f32 %v145, 0.044715
    %v148 = vadd.f32 %v136, %v146
    %v149 = vadd.f32 %v139, %v147
    %v150 = vmul.f32 %v148, 0.7978846
    %v151 = vmul.f32 %v149, 0.7978846
    %v152 = vtanh.pop %v150
    %v153 = vtanh.pop %v151
    %v154 = vadd.f32 %v152, 1.0
    %v155 = vadd.f32 %v153, 1.0
    %v156 = vmul.f32 %v154, 0.5
    %v157 = vmul.f32 %v155, 0.5
    %v158 = vmul.f32 %v136, %v156
    %v159 = vmul.f32 %v139, %v157
    %v160 = vpack.c.bf16 %v159, %v158
    %v161 = vld [vmem:[%s3] sm:$0xf]
    %v162 = vld [vmem:[%s3 + $0x4] sm:$0xf]
    %v163 = vld [vmem:[%s3 + $0x8] sm:$0xf]
    %v164 = vld [vmem:[%s3 + $0xc] sm:$0xf]
    %v165 = vld [vmem:[%s3 + $0x10] sm:$0xf]
    %v166 = vld [vmem:[%s3 + $0x14] sm:$0xf]
    %v167 = vld [vmem:[%s3 + $0x18] sm:$0xf]
    %v168 = vld [vmem:[%s3 + $0x1c] sm:$0xf]
    %v169 = vld [vmem:[%s3 + $0x20] sm:$0xf]
    %v170 = vld [vmem:[%s3 + $0x24] sm:$0xf]
    %v171 = vld [vmem:[%s3 + $0x28] sm:$0xf]
    %v172 = vld [vmem:[%s3 + $0x2c] sm:$0xf]
    %v173 = vld [vmem:[%s3 + $0x30] sm:$0xf]
    %v174 = vld [vmem:[%s3 + $0x34] sm:$0xf]
    %v175 = vld [vmem:[%s3 + $0x38] sm:$0xf]
    %v176 = vld [vmem:[%s3 + $0x3c] sm:$0xf]
    %v177 = vld [vmem:[%s4] sm:$0x1]
    %v179 = vlaneseq
    %v180 = vshrl.u32 %v179, 7
    %v181 = vsub.s32 0, %v180
    %v182 = vrot.slane %v177, %v181
    %v200 = vunpack.c.l.b16 %v161
    %v201 = vunpack.c.l.b16 %v162
    %v202 = vunpack.c.l.b16 %v163
    %v203 = vunpack.c.l.b16 %v164
    %v204 = vunpack.c.l.b16 %v165
    %v205 = vunpack.c.l.b16 %v166
    %v206 = vunpack.c.l.b16 %v167
    %v207 = vunpack.c.l.b16 %v168
    %v208 = vunpack.c.l.b16 %v169
    %v209 = vunpack.c.l.b16 %v170
    %v210 = vunpack.c.l.b16 %v171
    %v211 = vunpack.c.l.b16 %v172
    %v212 = vunpack.c.l.b16 %v173
    %v213 = vunpack.c.l.b16 %v174
    %v214 = vunpack.c.l.b16 %v175
    %v215 = vunpack.c.l.b16 %v176
    %v216 = vpack.c.b16 %v201, %v200
    %v217 = vpack.c.b16 %v203, %v202
    %v218 = vpack.c.b16 %v205, %v204
    %v219 = vpack.c.b16 %v207, %v206
    %v220 = vpack.c.b16 %v209, %v208
    %v221 = vpack.c.b16 %v211, %v210
    %v222 = vpack.c.b16 %v213, %v212
    %v223 = vpack.c.b16 %v215, %v214
    %232 = vmatprep.subr.bf16.mxu0 0
    %233 = vmatpush1.bf16.msra.mxu0 %v216
    %234 = vmatprep.subr.bf16.mxu0 0
    %235 = vmatpush1.bf16.msra.mxu0 %v217
    %236 = vmatprep.subr.bf16.mxu0 0
    %237 = vmatpush1.bf16.msra.mxu0 %v218
    %238 = vmatprep.subr.bf16.mxu0 0
    %239 = vmatpush1.bf16.msra.mxu0 %v219
    %240 = vmatprep.subr.bf16.mxu0 0
    %241 = vmatpush1.bf16.msra.mxu0 %v220
    %242 = vmatprep.subr.bf16.mxu0 0
    %243 = vmatpush1.bf16.msra.mxu0 %v221
    %244 = vmatprep.subr.bf16.mxu0 0
    %245 = vmatpush1.bf16.msra.mxu0 %v222
    %246 = vmatprep.subr.bf16.mxu0 0
    %247 = vmatpush1.bf16.msra.mxu0 %v223
    %248 = vmatprep.subr.bf16.mxu0 0
    %249 = vmatpush1.bf16.msra.mxu0 0
    %250 = vmatprep.subr.bf16.mxu0 0
    %251 = vmatpush1.bf16.msra.mxu0 0
    %252 = vmatprep.subr.bf16.mxu0 0
    %253 = vmatpush1.bf16.msra.mxu0 0
    %254 = vmatprep.subr.bf16.mxu0 0
    %255 = vmatpush1.bf16.msra.mxu0 0
    %256 = vmatprep.subr.bf16.mxu0 0
    %257 = vmatpush1.bf16.msra.mxu0 0
    %258 = vmatprep.subr.bf16.mxu0 0
    %259 = vmatpush1.bf16.msra.mxu0 0
    %260 = vmatprep.subr.bf16.mxu0 0
    %261 = vmatpush1.bf16.msra.mxu0 0
    %262 = vmatprep.subr.bf16.mxu0 0
    %263 = vmatpush1.bf16.msra.mxu0 0
    %264 = vmatprep.mubr.bf16.mxu0 0
    %265 = vmatmul.mubr.bf16.gmra.mrb[0].mxu0 %v160
    %v266 = vpop.f32.mrb[0].mxu0
    %v267 = vadd.f32 %v182, %v266
    %v268 = vpop.f32.mrb[0].mxu0
    %v269 = vpop.f32.mrb[0].mxu0
    %v270 = vadd.f32 %v182, %v269
    %v271 = vpop.f32.mrb[0].mxu0
    %272 = vdwg.mxu0
    %273 = vst [vmem:[#allocation2] sm:$0xff] %v267
    %274 = vst [vmem:[#allocation2 + $0x8] sm:$0xff] %v270
    // Predicated region
    $region22: #{_ffn_impl.1} parent=1 // pred_check
      _
    $region23: #{_ffn_impl.1} parent=1 // pred_check_branch
      %276 = sbr.rel (0) target = $region25
    $region24: #{_ffn_impl.1} parent=1 // pred_region
      %s278 = ssub.s32 256, 256
      %279 = vsyncadd [#allocation3], %s278
      %s280 = sshll.u32 [#allocation2], 4
      %s281 = int_to_ptr.vmem [resolvable:$true] %s280
      %286 = dma.vmem_to_hbm [thread:$0]  %s281, 256, %s5, [#allocation3], 128, 128, 8
    $region25: #{_ffn_impl.1} parent=1 // pred_fallthru
      _
    // Predicated region
    $region26: #{_ffn_impl.1} parent=1 // pred_check
      _
    $region27: #{_ffn_impl.1} parent=1 // pred_check_branch
      %288 = sbr.rel (0) target = $region29
    $region28: #{_ffn_impl.1} parent=1 // pred_region
      %289 = dma.done [#allocation3], 256
    $region29: #{_ffn_impl.1} parent=1 // pred_fallthru
      _
    %290 = vsyncpa [#allocation3], 1

</llo_original>
